<compile_context>
chip_gen: v6e
topology: v6e:2x2x1
jax: 0.10.0
libtpu: 0.0.40
codegen_flags: <defaults>
</compile_context>

<pallas_src>
import functools

import jax
import jax.numpy as jnp
from jax.experimental import pallas as pl
from jax.experimental.pallas import tpu as pltpu


def _psp_ce_kernel(main_ref, aux_ref, tgt_ref,
                   wce_acc, cnt_acc,
                   *, hw, tile, ignore_index, main_w, aux_w):
    j = pl.program_id(1)

    @pl.when(j == 0)
    def _():
        wce_acc[...] = jnp.zeros_like(wce_acc)
        cnt_acc[...] = jnp.zeros_like(cnt_acc)

    t = tgt_ref[...]                                          # (1, 1, tile) int32

    # pixel validity: in-bounds (ragged last tile) and not ignore_index
    pix = jax.lax.broadcasted_iota(jnp.int32, t.shape, 2) + j * tile
    valid = (pix < hw) & (t != ignore_index)                  # (1, 1, tile) bool

    def ce(logits_ref):
        # classes on sublanes (axis 1), pixels lane-dense (axis 2)
        x = logits_ref[...].astype(jnp.float32)               # (1, C, tile)
        m = jnp.max(x, axis=1, keepdims=True)                 # (1, 1, tile)
        # TODO(synk): if a v7x bundle dump shows the single EUP slot saturating,
        # compute exp(x - m) in bf16 and keep log / accumulation in f32.
        lse = m + jnp.log(jnp.sum(jnp.exp(x - m), axis=1, keepdims=True))
        cls = jax.lax.broadcasted_iota(jnp.int32, x.shape, 1)
        tgt_logit = jnp.sum(jnp.where(cls == t, x, 0.0), axis=1, keepdims=True)
        return lse - tgt_logit                                # (1, 1, tile)

    wce = main_w * ce(main_ref) + aux_w * ce(aux_ref)
    # Keep jnp.where (a lanewise select) for masking: the ragged last tile holds
    # padded data whose CE may be Inf/NaN; arithmetic masking would propagate it.
    wce_acc[...] += jnp.where(valid, wce, 0.0)
    cnt_acc[...] += valid.astype(jnp.float32)


def _vmem_capacity_bytes():
    try:
        cap = int(getattr(pltpu.get_tpu_info(), "vmem_capacity_bytes", 0))
    except Exception:
        cap = 0
    return cap if cap > 0 else 64 * 1024 * 1024  # conservative (v7x per-TC VMEM)


def _pick_tile(hw, c, itemsize):
    """Lane tile (pixels), sized so one logits block is ~1-4 MiB (C- and
    generation-aware). That measures near the HBM roofline while keeping the
    full pipelined footprint (2 heads x 2 buffers + targets + accumulators)
    well inside every generation's VMEM."""
    if hw < 128:
        return hw  # tiny spatial extent: one full (non-128-multiple) block
    cap = _vmem_capacity_bytes()
    # Per-head-per-buffer block budget: 1/16 of VMEM, clamped to [1, 4] MiB.
    per_block = max(min(cap // 16, 4 << 20), 1 << 20)
    tile = (per_block // max(c * itemsize, 1)) // 128 * 128
    tile = max(tile, 128)
    return min(tile, (hw // 128) * 128)


def psp_loss(outputs, targets, aux_weight=0.4, ignore_index=-100):
    """outputs: (main_logits, aux_logits), each (N, C, H, W); targets: (N, H, W)."""
    main_logits, aux_logits = outputs
    N, C, H, W = main_logits.shape
    HW = H * W
    itemsize = jnp.dtype(main_logits.dtype).itemsize

    # Free reshapes only (contiguous views); logits keep their native dtype.
    main3 = main_logits.reshape(N, C, HW)
    aux3 = aux_logits.reshape(N, C, HW)
    tgt3 = targets.astype(jnp.int32).reshape(N, 1, HW)

    tile = _pick_tile(HW, C, itemsize)
    n_tiles = pl.cdiv(HW, tile)

    kernel = functools.partial(
        _psp_ce_kernel, hw=HW, tile=tile, ignore_index=ignore_index,
        main_w=float(1.0 - aux_weight), aux_w=float(aux_weight))

    acc_shape = jax.ShapeDtypeStruct((N, 1, tile), jnp.float32)
    acc_spec = pl.BlockSpec((1, 1, tile), lambda n, j: (n, 0, 0))

    # Explicit scoped-VMEM limit: the default (16 MiB v5e / 32 MiB v6e, v7x) is
    # what gates tile size, not physical VMEM. Keep <= 56 MiB so it fits v7x.
    footprint = (4 * C * tile * itemsize      # 2 heads x 2 pipeline buffers
                 + 2 * tile * 4               # targets, double buffered
                 + 4 * tile * 4)              # 2 accumulators, double buffered
    vmem_limit = int(min(max(footprint + (8 << 20), 32 << 20), 56 << 20))

    wce_acc, cnt_acc = pl.pallas_call(
        kernel,
        out_shape=(acc_shape, acc_shape),
        grid_spec=pltpu.PrefetchScalarGridSpec(
            num_scalar_prefetch=0,
            grid=(N, n_tiles),
            in_specs=[
                pl.BlockSpec((1, C, tile), lambda n, j: (n, 0, j)),
                pl.BlockSpec((1, C, tile), lambda n, j: (n, 0, j)),
                pl.BlockSpec((1, 1, tile), lambda n, j: (n, 0, j)),
            ],
            out_specs=(acc_spec, acc_spec),
        ),
        compiler_params=pltpu.CompilerParams(
            # Per-sample accumulator blocks let axis 0 shard across v7x's two
            # TensorCores; the pixel-tile reduction axis is last and "arbitrary".
            dimension_semantics=("parallel", "arbitrary"),
            vmem_limit_bytes=vmem_limit),
        # TODO(synk): if N == 1 on v7x, split n_tiles over a leading size-2
        # parallel axis with per-core partial accumulators instead.
    )(main3, aux3, tgt3)

    # Single cross-lane reduction, done once outside the grid loop.
    cnt = jnp.maximum(jnp.sum(cnt_acc), 1.0)   # guard: all pixels ignored
    return jnp.sum(wce_acc) / cnt


if __name__ == "__main__":
    key = jax.random.PRNGKey(0)
    k1, k2, k3 = jax.random.split(key, 3)

    N, C, H, W = 2, 4, 16, 16
    main_logits = jax.random.normal(k1, (N, C, H, W), dtype=jnp.float32)
    aux_logits = jax.random.normal(k2, (N, C, H, W), dtype=jnp.float32)
    targets = jax.random.randint(k3, (N, H, W), 0, C, dtype=jnp.int32)

    loss = jax.jit(psp_loss)((main_logits, aux_logits), targets)
    jax.block_until_ready(loss)

    # pure-JAX reference (log_softmax cross entropy, mean over pixels)
    def ref_ce(logits, tgt):
        x = jnp.transpose(logits, (0, 2, 3, 1)).reshape(-1, C)
        t = tgt.reshape(-1)
        logp = jax.nn.log_softmax(x, axis=-1)
        return -jnp.mean(logp[jnp.arange(x.shape[0]), t])

    ref = 0.6 * ref_ce(main_logits, targets) + 0.4 * ref_ce(aux_logits, targets)
    assert jnp.allclose(loss, ref, atol=1e-5, rtol=1e-5), (loss, ref)

    print("KERNEL_OK")
</pallas_src>

<mosaic_0001>
module attributes {stable_mosaic.version = 11 : i64} {
  func.func @_psp_ce_kernel(%arg0: i32, %arg1: i32, %arg2: memref<1x4x256xf32, #tpu.memory_space<vmem>>, %arg3: memref<1x4x256xf32, #tpu.memory_space<vmem>>, %arg4: memref<1x1x256xi32, #tpu.memory_space<vmem>>, %arg5: memref<1x1x256xf32, #tpu.memory_space<vmem>>, %arg6: memref<1x1x256xf32, #tpu.memory_space<vmem>>) attributes {dimension_semantics = [#tpu.dimension_semantics<parallel>, #tpu.dimension_semantics<arbitrary>], iteration_bounds = array<i64: 2, 1>, scalar_prefetch = 0 : i64, scratch_operands = 0 : i64, tpu.core_type = #tpu.core_type<tc>, window_params = [{transform_indices = @transform_0, window_bounds = array<i64: 1, 4, 256>}, {transform_indices = @transform_1, window_bounds = array<i64: 1, 4, 256>}, {transform_indices = @transform_2, window_bounds = array<i64: 1, 1, 256>}, {transform_indices = @transform_3, window_bounds = array<i64: 1, 1, 256>}, {transform_indices = @transform_4, window_bounds = array<i64: 1, 1, 256>}]} {
    %c0_i32 = arith.constant 0 : i32
    %0 = arith.cmpi eq, %arg1, %c0_i32 : i32
    %1 = arith.extui %0 : i1 to i32
    %c0_i32_0 = arith.constant 0 : i32
    %2 = arith.cmpi ne, %1, %c0_i32_0 : i32
    scf.if %2 {
      %cst_32 = arith.constant 0.000000e+00 : f32
      %64 = vector.broadcast %cst_32 : f32 to vector<1x1x256xf32>
      %c0_33 = arith.constant 0 : index
      %c0_34 = arith.constant 0 : index
      %c0_35 = arith.constant 0 : index
      %65 = vector.load %arg5[%c0_33, %c0_34, %c0_35] : memref<1x1x256xf32, #tpu.memory_space<vmem>>, vector<1x1x256xf32>
      tpu.vector_store %arg5[%c0_33, %c0_34, %c0_35], %64 {strides = array<i32>} : memref<1x1x256xf32, #tpu.memory_space<vmem>>, vector<1x1x256xf32>,
      %cst_36 = arith.constant 0.000000e+00 : f32
      %66 = vector.broadcast %cst_36 : f32 to vector<1x1x256xf32>
      %c0_37 = arith.constant 0 : index
      %c0_38 = arith.constant 0 : index
      %c0_39 = arith.constant 0 : index
      %67 = vector.load %arg6[%c0_37, %c0_38, %c0_39] : memref<1x1x256xf32, #tpu.memory_space<vmem>>, vector<1x1x256xf32>
      tpu.vector_store %arg6[%c0_37, %c0_38, %c0_39], %66 {strides = array<i32>} : memref<1x1x256xf32, #tpu.memory_space<vmem>>, vector<1x1x256xf32>,
    } else {
    }
    %c0 = arith.constant 0 : index
    %c0_1 = arith.constant 0 : index
    %c0_2 = arith.constant 0 : index
    %3 = vector.load %arg4[%c0, %c0_1, %c0_2] : memref<1x1x256xi32, #tpu.memory_space<vmem>>, vector<1x1x256xi32>
    %4 = tpu.iota {dimensions = array<i32: 2>} : vector<1x1x256xi32>
    %c256_i32 = arith.constant 256 : i32
    %5 = arith.muli %arg1, %c256_i32 : i32
    %6 = vector.broadcast %5 : i32 to vector<1x1x256xi32>
    %7 = arith.addi %4, %6 : vector<1x1x256xi32>
    %c256_i32_3 = arith.constant 256 : i32
    %8 = vector.broadcast %c256_i32_3 : i32 to vector<1x1x256xi32>
    %9 = arith.cmpi slt, %7, %8 : vector<1x1x256xi32>
    %c-100_i32 = arith.constant -100 : i32
    %10 = vector.broadcast %c-100_i32 : i32 to vector<1x1x256xi32>
    %11 = arith.cmpi ne, %3, %10 : vector<1x1x256xi32>
    %12 = arith.andi %9, %11 : vector<1x1x256xi1>
    %c0_4 = arith.constant 0 : index
    %c0_5 = arith.constant 0 : index
    %c0_6 = arith.constant 0 : index
    %13 = vector.load %arg2[%c0_4, %c0_5, %c0_6] : memref<1x4x256xf32, #tpu.memory_space<vmem>>, vector<1x4x256xf32>
    %cst = arith.constant dense<0xFF800000> : vector<1x256xf32>
    %14 = vector.multi_reduction <maximumf>, %13, %cst [1] : vector<1x4x256xf32> to vector<1x256xf32>
    %15 = vector.shape_cast %14 : vector<1x256xf32> to vector<1x1x256xf32>
    %16 = vector.broadcast %15 : vector<1x1x256xf32> to vector<1x4x256xf32>
    %17 = arith.subf %13, %16 : vector<1x4x256xf32>
    %18 = math.exp %17 : vector<1x4x256xf32>
    %cst_7 = arith.constant dense<0.000000e+00> : vector<1x256xf32>
    %19 = vector.multi_reduction <add>, %18, %cst_7 [1] : vector<1x4x256xf32> to vector<1x256xf32>
    %20 = vector.shape_cast %19 : vector<1x256xf32> to vector<1x1x256xf32>
    %21 = math.log %20 : vector<1x1x256xf32>
    %22 = arith.addf %15, %21 : vector<1x1x256xf32>
    %23 = tpu.iota {dimensions = array<i32: 1>} : vector<1x4x256xi32>
    %24 = vector.broadcast %3 : vector<1x1x256xi32> to vector<1x4x256xi32>
    %25 = arith.cmpi eq, %23, %24 : vector<1x4x256xi32>
    %cst_8 = arith.constant 0.000000e+00 : f32
    %26 = vector.broadcast %cst_8 : f32 to vector<1x4x256xf32>
    %27 = arith.select %25, %13, %26 : vector<1x4x256xi1>, vector<1x4x256xf32>
    %cst_9 = arith.constant dense<0.000000e+00> : vector<1x256xf32>
    %28 = vector.multi_reduction <add>, %27, %cst_9 [1] : vector<1x4x256xf32> to vector<1x256xf32>
    %29 = vector.shape_cast %28 : vector<1x256xf32> to vector<1x1x256xf32>
    %30 = arith.subf %22, %29 : vector<1x1x256xf32>
    %cst_10 = arith.constant 6.000000e-01 : f32
    %31 = vector.broadcast %cst_10 : f32 to vector<1x1x256xf32>
    %32 = arith.mulf %31, %30 : vector<1x1x256xf32>
    %c0_11 = arith.constant 0 : index
    %c0_12 = arith.constant 0 : index
    %c0_13 = arith.constant 0 : index
    %33 = vector.load %arg3[%c0_11, %c0_12, %c0_13] : memref<1x4x256xf32, #tpu.memory_space<vmem>>, vector<1x4x256xf32>
    %cst_14 = arith.constant dense<0xFF800000> : vector<1x256xf32>
    %34 = vector.multi_reduction <maximumf>, %33, %cst_14 [1] : vector<1x4x256xf32> to vector<1x256xf32>
    %35 = vector.shape_cast %34 : vector<1x256xf32> to vector<1x1x256xf32>
    %36 = vector.broadcast %35 : vector<1x1x256xf32> to vector<1x4x256xf32>
    %37 = arith.subf %33, %36 : vector<1x4x256xf32>
    %38 = math.exp %37 : vector<1x4x256xf32>
    %cst_15 = arith.constant dense<0.000000e+00> : vector<1x256xf32>
    %39 = vector.multi_reduction <add>, %38, %cst_15 [1] : vector<1x4x256xf32> to vector<1x256xf32>
    %40 = vector.shape_cast %39 : vector<1x256xf32> to vector<1x1x256xf32>
    %41 = math.log %40 : vector<1x1x256xf32>
    %42 = arith.addf %35, %41 : vector<1x1x256xf32>
    %43 = tpu.iota {dimensions = array<i32: 1>} : vector<1x4x256xi32>
    %44 = vector.broadcast %3 : vector<1x1x256xi32> to vector<1x4x256xi32>
    %45 = arith.cmpi eq, %43, %44 : vector<1x4x256xi32>
    %cst_16 = arith.constant 0.000000e+00 : f32
    %46 = vector.broadcast %cst_16 : f32 to vector<1x4x256xf32>
    %47 = arith.select %45, %33, %46 : vector<1x4x256xi1>, vector<1x4x256xf32>
    %cst_17 = arith.constant dense<0.000000e+00> : vector<1x256xf32>
    %48 = vector.multi_reduction <add>, %47, %cst_17 [1] : vector<1x4x256xf32> to vector<1x256xf32>
    %49 = vector.shape_cast %48 : vector<1x256xf32> to vector<1x1x256xf32>
    %50 = arith.subf %42, %49 : vector<1x1x256xf32>
    %cst_18 = arith.constant 4.000000e-01 : f32
    %51 = vector.broadcast %cst_18 : f32 to vector<1x1x256xf32>
    %52 = arith.mulf %51, %50 : vector<1x1x256xf32>
    %53 = arith.addf %32, %52 : vector<1x1x256xf32>
    %c0_19 = arith.constant 0 : index
    %c0_20 = arith.constant 0 : index
    %c0_21 = arith.constant 0 : index
    %54 = vector.load %arg5[%c0_19, %c0_20, %c0_21] : memref<1x1x256xf32, #tpu.memory_space<vmem>>, vector<1x1x256xf32>
    %cst_22 = arith.constant 0.000000e+00 : f32
    %55 = vector.broadcast %cst_22 : f32 to vector<1x1x256xf32>
    %56 = arith.select %12, %53, %55 : vector<1x1x256xi1>, vector<1x1x256xf32>
    %57 = arith.addf %54, %56 : vector<1x1x256xf32>
    %c0_23 = arith.constant 0 : index
    %c0_24 = arith.constant 0 : index
    %c0_25 = arith.constant 0 : index
    %58 = vector.load %arg5[%c0_23, %c0_24, %c0_25] : memref<1x1x256xf32, #tpu.memory_space<vmem>>, vector<1x1x256xf32>
    tpu.vector_store %arg5[%c0_23, %c0_24, %c0_25], %57 {strides = array<i32>} : memref<1x1x256xf32, #tpu.memory_space<vmem>>, vector<1x1x256xf32>,
    %c0_26 = arith.constant 0 : index
    %c0_27 = arith.constant 0 : index
    %c0_28 = arith.constant 0 : index
    %59 = vector.load %arg6[%c0_26, %c0_27, %c0_28] : memref<1x1x256xf32, #tpu.memory_space<vmem>>, vector<1x1x256xf32>
    %60 = arith.extui %12 : vector<1x1x256xi1> to vector<1x1x256xi32>
    %61 = arith.sitofp %60 : vector<1x1x256xi32> to vector<1x1x256xf32>
    %62 = arith.addf %59, %61 : vector<1x1x256xf32>
    %c0_29 = arith.constant 0 : index
    %c0_30 = arith.constant 0 : index
    %c0_31 = arith.constant 0 : index
    %63 = vector.load %arg6[%c0_29, %c0_30, %c0_31] : memref<1x1x256xf32, #tpu.memory_space<vmem>>, vector<1x1x256xf32>
    tpu.vector_store %arg6[%c0_29, %c0_30, %c0_31], %62 {strides = array<i32>} : memref<1x1x256xf32, #tpu.memory_space<vmem>>, vector<1x1x256xf32>,
    return
  }
  func.func @transform_0(%arg0: i32, %arg1: i32) -> (i32, i32, i32) {
    %c0_i32 = arith.constant 0 : i32
    %c0_i32_0 = arith.constant 0 : i32
    return %arg0, %c0_i32, %arg1 : i32, i32, i32
  }
  func.func @transform_1(%arg0: i32, %arg1: i32) -> (i32, i32, i32) {
    %c0_i32 = arith.constant 0 : i32
    %c0_i32_0 = arith.constant 0 : i32
    return %arg0, %c0_i32, %arg1 : i32, i32, i32
  }
  func.func @transform_2(%arg0: i32, %arg1: i32) -> (i32, i32, i32) {
    %c0_i32 = arith.constant 0 : i32
    %c0_i32_0 = arith.constant 0 : i32
    return %arg0, %c0_i32, %arg1 : i32, i32, i32
  }
  func.func @transform_3(%arg0: i32, %arg1: i32) -> (i32, i32, i32) {
    %c0_i32 = arith.constant 0 : i32
    %c0_i32_0 = arith.constant 0 : i32
    %c0_i32_1 = arith.constant 0 : i32
    return %arg0, %c0_i32, %c0_i32_0 : i32, i32, i32
  }
  func.func @transform_4(%arg0: i32, %arg1: i32) -> (i32, i32, i32) {
    %c0_i32 = arith.constant 0 : i32
    %c0_i32_0 = arith.constant 0 : i32
    %c0_i32_1 = arith.constant 0 : i32
    return %arg0, %c0_i32, %c0_i32_0 : i32, i32, i32
  }
}

</mosaic_0001>

<llo_original>
// kernel: psp_loss.1
$region0: #{psp_loss.1}
  #allocation0 [shape = 'u32[]', space=smem, size = 0x4, offset = 0x4, fixed_abs, tag = 'smem constant byte address 0x4 - core index']
  #allocation1 [shape = 'u32[144,128]{1,0:T(1,128)}', space=vmem, size = 0x12000, scoped, tag = 'internal scratch']
  %s0 = inlined_call_operand.vmem [shape: f32[2,4,256], index: 0, kind: input, shape index: {}]
  %s1 = inlined_call_operand.vmem [shape: f32[2,4,256], index: 1, kind: input, shape index: {}]
  %s2 = inlined_call_operand.vmem [shape: s32[2,1,256], index: 2, kind: input, shape index: {}]
  %s3 = inlined_call_operand.vmem [shape: f32[2,1,256], index: 3, kind: output, shape index: {0}]
  %s4 = inlined_call_operand.vmem [shape: f32[2,1,256], index: 4, kind: output, shape index: {1}]
  %5 = xla_tuple %s3, %s4
  %s6 = sld [smem:[#allocation0]]
  $region57: #{psp_loss.1} parent=0
    _
  %s8 = ssub.s32 1, %s6
  %s9 = scalar_select 0, %s8, %s6
  loop: start=0, step=1, limit=4
  $region2: #{psp_loss.1} parent=0 // loop_pre_header
    _
  $region3: #{psp_loss.1} parent=0 // loop_header
    %s11 = sphi 0, %s15
    %p12 = scmp.ge.s32.totalorder %s11, 4
    %s18 = sphi 0, %s30
    %s19 = sphi 0, %s26
    %s20 = sphi 0, %s18
    %s21 = sphi 0, %s19
    %s22 = sphi 0, %s20
    %s23 = sphi 0, %s21
    %s35 = sphi 0, %s37
    %s38 = sphi 0, %s35
    %s39 = sphi 0, %s38
    %s55 = sphi 0, %s39
    %s63 = sphi 0, %s65
    %s66 = sphi 0, %s63
    %s67 = sphi 0, %s66
    %s83 = sphi 0, %s67
    %s91 = sphi 0, %s93
    %s94 = sphi 0, %s91
    %s95 = sphi 0, %s94
    %s111 = sphi 0, %s95
    %s117 = sphi 0, %s119
    %s120 = sphi 0, %s117
    %s121 = sphi 0, %s120
    %s137 = sphi 0, %s121
    %s143 = sphi 0, %s145
    %s146 = sphi 0, %s143
    %s147 = sphi 0, %s146
    %s163 = sphi 0, %s147
  $region4: #{psp_loss.1} parent=0 // loop_header_branch
    %14 = sbr.rel (%p12) target = $region8
  $region5: #{psp_loss.1} parent=0 // loop_body
    %s16 = ssub.s32 %s11, 1
    %s17 = ssub.s32 %s11, 2
    %s24 = sadd.s32 1, %s19
    %p25 = scmp.ge.s32.totalorder %s24, 1
    %s26 = scalar_select %p25, 0, %s24
    %s27 = sadd.s32 1, %s18
    %s28 = scalar_select %p25, %s27, %s18
    %p29 = scmp.ge.s32.totalorder %s28, 2
    %s30 = scalar_select %p29, 0, %s28
    %s31 = ssub.s32 %s18, %s30
    %s32 = ssub.s32 %s19, %s26
    %s33 = sor.u32 %s31, %s32
    %p34 = scmp.eq.s32.totalorder %s33, 0
    %s36 = sadd.s32 %s35, 1
    %s37 = scalar_select %p34, %s35, %s36
    %p40 = pneg %p34
    %p41 = scmp.eq.s32.totalorder %s11, 1
    %p42 = por %p40, %p41
    %p43 = scmp.ne.s32.totalorder %s35, %s38
    %p44 = scmp.eq.s32.totalorder %s11, 0
    %p45 = por %p43, %p44
    %p46 = scmp.ne.s32.totalorder %s35, %s38
    %p47 = scmp.eq.s32.totalorder %s16, 1
    %p48 = por %p46, %p47
    %p49 = scmp.ne.s32.totalorder %s38, %s39
    %p50 = scmp.eq.s32.totalorder %s16, 0
    %p51 = por %p49, %p50
    %p52 = scmp.ne.s32.totalorder %s38, %s39
    %p53 = scmp.eq.s32.totalorder %s17, 1
    %p54 = por %p52, %p53
    %p56 = scmp.ne.s32.totalorder %s39, %s55
    %p57 = scmp.eq.s32.totalorder %s17, 0
    %p58 = por %p56, %p57
    %s59 = ssub.s32 %s18, %s30
    %s60 = ssub.s32 %s19, %s26
    %s61 = sor.u32 %s59, %s60
    %p62 = scmp.eq.s32.totalorder %s61, 0
    %s64 = sadd.s32 %s63, 1
    %s65 = scalar_select %p62, %s63, %s64
    %p68 = pneg %p62
    %p69 = scmp.eq.s32.totalorder %s11, 1
    %p70 = por %p68, %p69
    %p71 = scmp.ne.s32.totalorder %s63, %s66
    %p72 = scmp.eq.s32.totalorder %s11, 0
    %p73 = por %p71, %p72
    %p74 = scmp.ne.s32.totalorder %s63, %s66
    %p75 = scmp.eq.s32.totalorder %s16, 1
    %p76 = por %p74, %p75
    %p77 = scmp.ne.s32.totalorder %s66, %s67
    %p78 = scmp.eq.s32.totalorder %s16, 0
    %p79 = por %p77, %p78
    %p80 = scmp.ne.s32.totalorder %s66, %s67
    %p81 = scmp.eq.s32.totalorder %s17, 1
    %p82 = por %p80, %p81
    %p84 = scmp.ne.s32.totalorder %s67, %s83
    %p85 = scmp.eq.s32.totalorder %s17, 0
    %p86 = por %p84, %p85
    %s87 = ssub.s32 %s18, %s30
    %s88 = ssub.s32 %s19, %s26
    %s89 = sor.u32 %s87, %s88
    %p90 = scmp.eq.s32.totalorder %s89, 0
    %s92 = sadd.s32 %s91, 1
    %s93 = scalar_select %p90, %s91, %s92
    %p96 = pneg %p90
    %p97 = scmp.eq.s32.totalorder %s11, 1
    %p98 = por %p96, %p97
    %p99 = scmp.ne.s32.totalorder %s91, %s94
    %p100 = scmp.eq.s32.totalorder %s11, 0
    %p101 = por %p99, %p100
    %p102 = scmp.ne.s32.totalorder %s91, %s94
    %p103 = scmp.eq.s32.totalorder %s16, 1
    %p104 = por %p102, %p103
    %p105 = scmp.ne.s32.totalorder %s94, %s95
    %p106 = scmp.eq.s32.totalorder %s16, 0
    %p107 = por %p105, %p106
    %p108 = scmp.ne.s32.totalorder %s94, %s95
    %p109 = scmp.eq.s32.totalorder %s17, 1
    %p110 = por %p108, %p109
    %p112 = scmp.ne.s32.totalorder %s95, %s111
    %p113 = scmp.eq.s32.totalorder %s17, 0
    %p114 = por %p112, %p113
    %s115 = ssub.s32 %s18, %s30
    %p116 = scmp.eq.s32.totalorder %s115, 0
    %s118 = sadd.s32 %s117, 1
    %s119 = scalar_select %p116, %s117, %s118
    %p122 = pneg %p116
    %p123 = scmp.eq.s32.totalorder %s11, 1
    %p124 = por %p122, %p123
    %p125 = scmp.ne.s32.totalorder %s117, %s120
    %p126 = scmp.eq.s32.totalorder %s11, 0
    %p127 = por %p125, %p126
    %p128 = scmp.ne.s32.totalorder %s117, %s120
    %p129 = scmp.eq.s32.totalorder %s16, 1
    %p130 = por %p128, %p129
    %p131 = scmp.ne.s32.totalorder %s120, %s121
    %p132 = scmp.eq.s32.totalorder %s16, 0
    %p133 = por %p131, %p132
    %p134 = scmp.ne.s32.totalorder %s120, %s121
    %p135 = scmp.eq.s32.totalorder %s17, 1
    %p136 = por %p134, %p135
    %p138 = scmp.ne.s32.totalorder %s121, %s137
    %p139 = scmp.eq.s32.totalorder %s17, 0
    %p140 = por %p138, %p139
    %s141 = ssub.s32 %s18, %s30
    %p142 = scmp.eq.s32.totalorder %s141, 0
    %s144 = sadd.s32 %s143, 1
    %s145 = scalar_select %p142, %s143, %s144
    %p148 = pneg %p142
    %p149 = scmp.eq.s32.totalorder %s11, 1
    %p150 = por %p148, %p149
    %p151 = scmp.ne.s32.totalorder %s143, %s146
    %p152 = scmp.eq.s32.totalorder %s11, 0
    %p153 = por %p151, %p152
    %p154 = scmp.ne.s32.totalorder %s143, %s146
    %p155 = scmp.eq.s32.totalorder %s16, 1
    %p156 = por %p154, %p155
    %p157 = scmp.ne.s32.totalorder %s146, %s147
    %p158 = scmp.eq.s32.totalorder %s16, 0
    %p159 = por %p157, %p158
    %p160 = scmp.ne.s32.totalorder %s146, %s147
    %p161 = scmp.eq.s32.totalorder %s17, 1
    %p162 = por %p160, %p161
    %p164 = scmp.ne.s32.totalorder %s147, %s163
    %p165 = scmp.eq.s32.totalorder %s17, 0
    %p166 = por %p164, %p165
    %p167 = scmp.le.s32.totalorder 1, %s11
    %p168 = scmp.lt.s32.totalorder %s11, 3
    %p169 = pnand %p167, %p168
    %p170 = pneg %p169
    // Predicated region
    $region9: #{psp_loss.1} parent=5 // pred_check
      _
    $region10: #{psp_loss.1} parent=5 // pred_check_branch
      %172 = sbr.rel (%p169) target = $region12
    $region11: #{psp_loss.1} parent=5 // pred_region
      %s173 = ssub.s32 %s11, 1
    $region12: #{psp_loss.1} parent=5 // pred_fallthru
      _
    %p174 = scmp.lt.s32.totalorder %s11, 2
    // Predicated region
    $region13: #{psp_loss.1} parent=5 // pred_check
      %p175 = pneg %p174
    $region14: #{psp_loss.1} parent=5 // pred_check_branch
      %177 = sbr.rel (%p175) target = $region16
    $region15: #{psp_loss.1} parent=5 // pred_region
      // Predicated region
      $region17: #{psp_loss.1} parent=15 // pred_check
        %p178 = pneg %p45
      $region18: #{psp_loss.1} parent=15 // pred_check_branch
        %180 = sbr.rel (%p178) target = $region20
      $region19: #{psp_loss.1} parent=15 // pred_region
        %s181 = smul.u32 2, %s19
        %p182 = scmp.lt.s32.totalorder %s18, 1
        %s183 = scalar_select %p182, %s18, 1
        %p184 = scmp.lt.s32.totalorder %s181, 1
        %s185 = scalar_select %p184, %s181, 1
        %s186 = smul.addr %s183, 2
        %s187 = sadd.s32 %s185, %s186
        %s188 = smul.addr %s187, 4
        %s189 = scalar_lea.vmem %s0, %s188
        %s190 = smul.u32 2, %s19
      $region20: #{psp_loss.1} parent=15 // pred_fallthru
        _
      // Predicated region
      $region21: #{psp_loss.1} parent=15 // pred_check
        %p191 = pneg %p73
      $region22: #{psp_loss.1} parent=15 // pred_check_branch
        %193 = sbr.rel (%p191) target = $region24
      $region23: #{psp_loss.1} parent=15 // pred_region
        %s194 = smul.u32 2, %s19
        %p195 = scmp.lt.s32.totalorder %s18, 1
        %s196 = scalar_select %p195, %s18, 1
        %p197 = scmp.lt.s32.totalorder %s194, 1
        %s198 = scalar_select %p197, %s194, 1
        %s199 = smul.addr %s196, 2
        %s200 = sadd.s32 %s198, %s199
        %s201 = smul.addr %s200, 4
        %s202 = scalar_lea.vmem %s1, %s201
        %s203 = smul.u32 2, %s19
      $region24: #{psp_loss.1} parent=15 // pred_fallthru
        _
      // Predicated region
      $region25: #{psp_loss.1} parent=15 // pred_check
        %p204 = pneg %p101
      $region26: #{psp_loss.1} parent=15 // pred_check_branch
        %206 = sbr.rel (%p204) target = $region28
      $region27: #{psp_loss.1} parent=15 // pred_region
        %s207 = smul.u32 2, %s19
        %p208 = scmp.lt.s32.totalorder %s18, 1
        %s209 = scalar_select %p208, %s18, 1
        %p210 = scmp.lt.s32.totalorder %s207, 1
        %s211 = scalar_select %p210, %s207, 1
        %s212 = smul.addr %s209, 2
        %s213 = sadd.s32 %s211, %s212
        %s214 = scalar_lea.vmem %s2, %s213
        %s215 = smul.u32 2, %s19
      $region28: #{psp_loss.1} parent=15 // pred_fallthru
        _
    $region16: #{psp_loss.1} parent=5 // pred_fallthru
      _
    %p216 = scmp.le.s32.totalorder 1, %s11
    %p217 = scmp.lt.s32.totalorder %s11, 3
    %p218 = pnand %p216, %p217
    %p219 = pneg %p218
    // Predicated region
    $region29: #{psp_loss.1} parent=5 // pred_check
      _
    $region30: #{psp_loss.1} parent=5 // pred_check_branch
      %221 = sbr.rel (%p218) target = $region32
    $region31: #{psp_loss.1} parent=5 // pred_region
      %s222 = ssub.s32 %s11, 1
      %s223 = smul.u32 2, %s21
      %p224 = scmp.lt.s32.totalorder %s20, 1
      %s225 = scalar_select %p224, %s20, 1
      %p226 = scmp.lt.s32.totalorder %s223, 1
      %s227 = scalar_select %p226, %s223, 1
      %s228 = smul.addr %s225, 2
      %s229 = sadd.s32 %s227, %s228
      %s230 = smul.addr %s229, 4
      %s231 = scalar_lea.vmem %s0, %s230
      %p232 = pneg %p51
      %p233 = pneg %p48
      %s234 = smul.u32 2, %s21
      %p235 = scmp.lt.s32.totalorder %s20, 1
      %s236 = scalar_select %p235, %s20, 1
      %p237 = scmp.lt.s32.totalorder %s234, 1
      %s238 = scalar_select %p237, %s234, 1
      %s239 = smul.addr %s236, 2
      %s240 = sadd.s32 %s238, %s239
      %s241 = smul.addr %s240, 4
      %s242 = scalar_lea.vmem %s1, %s241
      %p243 = pneg %p79
      %p244 = pneg %p76
      %s245 = smul.u32 2, %s21
      %p246 = scmp.lt.s32.totalorder %s20, 1
      %s247 = scalar_select %p246, %s20, 1
      %p248 = scmp.lt.s32.totalorder %s245, 1
      %s249 = scalar_select %p248, %s245, 1
      %s250 = smul.addr %s247, 2
      %s251 = sadd.s32 %s249, %s250
      %s252 = scalar_lea.vmem %s2, %s251
      %p253 = pneg %p107
      %p254 = pneg %p104
      %p255 = pneg %p133
      %p256 = pneg %p130
      %p257 = scmp.lt.s32.totalorder %s20, 1
      %s258 = scalar_select %p257, %s20, 1
      %s259 = smul.addr %s258, 2
      %s260 = scalar_lea.vmem %s3, %s259
      %p261 = pneg %p159
      %p262 = pneg %p156
      %p263 = scmp.lt.s32.totalorder %s20, 1
      %s264 = scalar_select %p263, %s20, 1
      %s265 = smul.addr %s264, 2
      %s266 = scalar_lea.vmem %s4, %s265
      %s267 = smul.u32 2, %s21
      %p268 = scmp.lt.s32.totalorder %s20, 1
      %s269 = scalar_select %p268, %s20, 1
      %p270 = scmp.lt.s32.totalorder %s267, 1
      %s271 = scalar_select %p270, %s267, 1
      %s272 = smul.addr %s269, 2
      %s273 = sadd.s32 %s271, %s272
      %s274 = smul.addr %s273, 4
      %s275 = scalar_lea.vmem %s0, %s274
      %s276 = smul.u32 2, %s21
      %s277 = smul.u32 2, %s21
      %p278 = scmp.lt.s32.totalorder %s20, 1
      %s279 = scalar_select %p278, %s20, 1
      %p280 = scmp.lt.s32.totalorder %s277, 1
      %s281 = scalar_select %p280, %s277, 1
      %s282 = smul.addr %s279, 2
      %s283 = sadd.s32 %s281, %s282
      %s284 = smul.addr %s283, 4
      %s285 = scalar_lea.vmem %s1, %s284
      %s286 = smul.u32 2, %s21
      %s287 = smul.u32 2, %s21
      %p288 = scmp.lt.s32.totalorder %s20, 1
      %s289 = scalar_select %p288, %s20, 1
      %p290 = scmp.lt.s32.totalorder %s287, 1
      %s291 = scalar_select %p290, %s287, 1
      %s292 = smul.addr %s289, 2
      %s293 = sadd.s32 %s291, %s292
      %s294 = scalar_lea.vmem %s2, %s293
      %s295 = smul.u32 2, %s21
      %p296 = scmp.lt.s32.totalorder %s20, 1
      %s297 = scalar_select %p296, %s20, 1
      %s298 = smul.addr %s297, 2
      %s299 = scalar_lea.vmem %s3, %s298
      %p300 = scmp.lt.s32.totalorder %s20, 1
      %s301 = scalar_select %p300, %s20, 1
      %s302 = smul.addr %s301, 2
      %s303 = scalar_lea.vmem %s4, %s302
      %p304 = scmp.eq.s32.totalorder %s21, 0
      // Predicated region
      $region33: #{psp_loss.1} parent=31 // pred_check
        %p305 = pneg %p304
      $region34: #{psp_loss.1} parent=31 // pred_check_branch
        %307 = sbr.rel (%p305) target = $region36
      $region35: #{psp_loss.1} parent=31 // pred_region
        %v308 = vlaneseq
        %vm309 = vcmp.ge.s32.totalorder %v308, 0
        %vm310 = vcmp.lt.s32.totalorder %v308, 256
        %vm311 = vmand %vm309, %vm310
        %312 = vst.msk [vmem:[%s299] sm:$0x3] %vm311, 0.0
        %313 = vst.msk [vmem:[%s303] sm:$0x3] %vm311, 0.0
      $region36: #{psp_loss.1} parent=31 // pred_fallthru
        _
      %v314 = vld [vmem:[%s294] sm:$0x3]
      %v315 = vlaneseq
      %v316 = vand.u32 %v315, 127
      %v317 = vadd.s32 %v316, 128
      %s318 = smul.u32 %s21, 256
      %v319 = vstv %s318
      %v320 = vadd.s32 %v316, %v319
      %v321 = vadd.s32 %v317, %v319
      %vm322 = vcmp.lt.s32.totalorder %v320, 256
      %vm323 = vcmp.lt.s32.totalorder %v321, 256
      %vm324 = vcmp.ne.s32.totalorder %v314, 4294967196
      %v325 = vsel %vm324, 1, 0
      %v326 = vlaneseq
      %v327 = vshrl.u32 %v326, 7
      %v328 = vsub.s32 0, %v327
      %v329 = vrot.slane %v325, %v328
      %v330 = vlaneseq
      %v331 = vshrl.u32 %v330, 7
      %v332 = vsub.s32 1, %v331
      %v333 = vrot.slane %v325, %v332
      %vm334 = vcmp.ne.s32.totalorder %v329, 0
      %vm335 = vcmp.ne.s32.totalorder %v333, 0
      %vm336 = vmand %vm322, %vm334
      %vm337 = vmand %vm323, %vm335
      %v338 = vld [vmem:[%s275] sm:$0xff]
      %v340 = vcombine.high %v338, %v338
      %vm342 = vcmask 1043456
      %v343 = vsel %vm342, %v338, -inf
      %v344 = vrot.slane %v343, 4
      %v345 = vmax.f32 %v343, %v344
      %v346 = vrot.slane %v345, 2
      %v347 = vmax.f32 %v345, %v346
      %v348 = vrot.slane %v347, 1
      %v349 = vmax.f32 %v347, %v348
      %v350 = vsel %vm342, %v340, -inf
      %v351 = vrot.slane %v350, 4
      %v352 = vmax.f32 %v350, %v351
      %v353 = vrot.slane %v352, 2
      %v354 = vmax.f32 %v352, %v353
      %v355 = vrot.slane %v354, 1
      %v356 = vmax.f32 %v354, %v355
      %v359 = vcombine.low %v349, %v356
      %v361 = vsub.f32 %v338, %v359
      %v362 = vmul.f32 %v361, 1.442695
      %v363 = vpow.pop %v362
      %v365 = vcombine.high %v363, %v363
      %v367 = vsel %vm342, %v363, 0.0
      %v368 = vrot.slane %v367, 4
      %v369 = vadd.f32 %v367, %v368
      %v370 = vrot.slane %v369, 2
      %v371 = vadd.f32 %v369, %v370
      %v372 = vrot.slane %v371, 1
      %v373 = vadd.f32 %v371, %v372
      %v374 = vsel %vm342, %v365, 0.0
      %v375 = vrot.slane %v374, 4
      %v376 = vadd.f32 %v374, %v375
      %v377 = vrot.slane %v376, 2
      %v378 = vadd.f32 %v376, %v377
      %v379 = vrot.slane %v378, 1
      %v380 = vadd.f32 %v378, %v379
      %v381 = vlog2.pop %v373
      %v382 = vmul.f32 %v381, 0.6931472
      %v383 = vlog2.pop %v380
      %v384 = vmul.f32 %v383, 0.6931472
      %v385 = vadd.f32 %v349, %v382
      %v386 = vadd.f32 %v356, %v384
      %v387 = vlaneseq
      %v388 = vshrl.u32 %v387, 7
      %v389 = vlaneseq
      %v390 = vshrl.u32 %v389, 7
      %v391 = vsub.s32 0, %v390
      %v392 = vrot.slane %v314, %v391
      %v393 = vlaneseq
      %v394 = vshrl.u32 %v393, 7
      %v395 = vsub.s32 1, %v394
      %v396 = vrot.slane %v314, %v395
      %vm397 = vcmp.eq.s32.totalorder %v388, %v392
      %vm398 = vcmp.eq.s32.totalorder %v388, %v396
      %v399 = vsel %vm397, %v338, 0.0
      %v400 = vsel %vm398, %v340, 0.0
      %v401 = vsel %vm342, %v399, 0.0
      %v402 = vrot.slane %v401, 4
      %v403 = vadd.f32 %v401, %v402
      %v404 = vrot.slane %v403, 2
      %v405 = vadd.f32 %v403, %v404
      %v406 = vrot.slane %v405, 1
      %v407 = vadd.f32 %v405, %v406
      %v408 = vsel %vm342, %v400, 0.0
      %v409 = vrot.slane %v408, 4
      %v410 = vadd.f32 %v408, %v409
      %v411 = vrot.slane %v410, 2
      %v412 = vadd.f32 %v410, %v411
      %v413 = vrot.slane %v412, 1
      %v414 = vadd.f32 %v412, %v413
      %v415 = vsub.f32 %v385, %v407
      %v416 = vsub.f32 %v386, %v414
      %v417 = vmul.f32 %v415, 0.6
      %v418 = vmul.f32 %v416, 0.6
      %v419 = vld [vmem:[%s285] sm:$0xff]
      %v421 = vcombine.high %v419, %v419
      %v423 = vsel %vm342, %v419, -inf
      %v424 = vrot.slane %v423, 4
      %v425 = vmax.f32 %v423, %v424
      %v426 = vrot.slane %v425, 2
      %v427 = vmax.f32 %v425, %v426
      %v428 = vrot.slane %v427, 1
      %v429 = vmax.f32 %v427, %v428
      %v430 = vsel %vm342, %v421, -inf
      %v431 = vrot.slane %v430, 4
      %v432 = vmax.f32 %v430, %v431
      %v433 = vrot.slane %v432, 2
      %v434 = vmax.f32 %v432, %v433
      %v435 = vrot.slane %v434, 1
      %v436 = vmax.f32 %v434, %v435
      %v439 = vcombine.low %v429, %v436
      %v441 = vsub.f32 %v419, %v439
      %v442 = vmul.f32 %v441, 1.442695
      %v443 = vpow.pop %v442
      %v445 = vcombine.high %v443, %v443
      %v447 = vsel %vm342, %v443, 0.0
      %v448 = vrot.slane %v447, 4
      %v449 = vadd.f32 %v447, %v448
      %v450 = vrot.slane %v449, 2
      %v451 = vadd.f32 %v449, %v450
      %v452 = vrot.slane %v451, 1
      %v453 = vadd.f32 %v451, %v452
      %v454 = vsel %vm342, %v445, 0.0
      %v455 = vrot.slane %v454, 4
      %v456 = vadd.f32 %v454, %v455
      %v457 = vrot.slane %v456, 2
      %v458 = vadd.f32 %v456, %v457
      %v459 = vrot.slane %v458, 1
      %v460 = vadd.f32 %v458, %v459
      %v461 = vlog2.pop %v453
      %v462 = vmul.f32 %v461, 0.6931472
      %v463 = vlog2.pop %v460
      %v464 = vmul.f32 %v463, 0.6931472
      %v465 = vadd.f32 %v429, %v462
      %v466 = vadd.f32 %v436, %v464
      %v467 = vsel %vm397, %v419, 0.0
      %v468 = vsel %vm398, %v421, 0.0
      %v469 = vsel %vm342, %v467, 0.0
      %v470 = vrot.slane %v469, 4
      %v471 = vadd.f32 %v469, %v470
      %v472 = vrot.slane %v471, 2
      %v473 = vadd.f32 %v471, %v472
      %v474 = vrot.slane %v473, 1
      %v475 = vadd.f32 %v473, %v474
      %v476 = vsel %vm342, %v468, 0.0
      %v477 = vrot.slane %v476, 4
      %v478 = vadd.f32 %v476, %v477
      %v479 = vrot.slane %v478, 2
      %v480 = vadd.f32 %v478, %v479
      %v481 = vrot.slane %v480, 1
      %v482 = vadd.f32 %v480, %v481
      %v483 = vsub.f32 %v465, %v475
      %v484 = vsub.f32 %v466, %v482
      %v485 = vmul.f32 %v483, 0.4
      %v486 = vmul.f32 %v484, 0.4
      %v487 = vadd.f32 %v417, %v485
      %v488 = vadd.f32 %v418, %v486
      %v489 = vld [vmem:[%s299] sm:$0x3]
      %v490 = vsel %vm336, %v487, 0.0
      %v491 = vsel %vm337, %v488, 0.0
      %v494 = vcombine.low %v490, %v491
      %v496 = vunpack.c.l.s4 1966171168
      %v497 = vunpack.c.0.s8 %v496
      %v498 = vlaneseq
      %v499 = vshrl.u32 %v498, 7
      %v500 = vsub.s32 %v497, %v499
      %v501 = vrot.slane %v494, %v500
      %v503 = vunpack.c.l.s4 1966171168
      %v504 = vunpack.c.0.s8 %v503
      %v505 = vlaneseq
      %v506 = vshrl.u32 %v505, 7
      %v507 = vsub.s32 %v504, %v506
      %v508 = vrot.slane %v501, %v507
      %v510 = vadd.f32 %v489, %v508
      %v511 = vlaneseq
      %vm512 = vcmp.ge.s32.totalorder %v511, 0
      %vm513 = vcmp.lt.s32.totalorder %v511, 256
      %vm514 = vmand %vm512, %vm513
      %515 = vst.msk [vmem:[%s299] sm:$0x3] %vm514, %v510
      %v516 = vld [vmem:[%s303] sm:$0x3]
      %v517 = vsel %vm336, 1, 0
      %v518 = vsel %vm337, 1, 0
      %v519 = vcvt.s32.f32 %v517
      %v520 = vcvt.s32.f32 %v518
      %v523 = vcombine.low %v519, %v520
      %v525 = vunpack.c.l.s4 1966171168
      %v526 = vunpack.c.0.s8 %v525
      %v527 = vlaneseq
      %v528 = vshrl.u32 %v527, 7
      %v529 = vsub.s32 %v526, %v528
      %v530 = vrot.slane %v523, %v529
      %v532 = vunpack.c.l.s4 1966171168
      %v533 = vunpack.c.0.s8 %v532
      %v534 = vlaneseq
      %v535 = vshrl.u32 %v534, 7
      %v536 = vsub.s32 %v533, %v535
      %v537 = vrot.slane %v530, %v536
      %v539 = vadd.f32 %v516, %v537
      %540 = vst.msk [vmem:[%s303] sm:$0x3] %vm514, %v539
      %p541 = scmp.lt.s32.totalorder %s20, 1
      %s542 = scalar_select %p541, %s20, 1
      %s543 = smul.addr %s542, 2
      %s544 = scalar_lea.vmem %s3, %s543
      %p545 = scmp.lt.s32.totalorder %s20, 1
      %s546 = scalar_select %p545, %s20, 1
      %s547 = smul.addr %s546, 2
      %s548 = scalar_lea.vmem %s4, %s547
      // Predicated region
      $region37: #{psp_loss.1} parent=31 // pred_check
        %p549 = pneg %p130
      $region38: #{psp_loss.1} parent=31 // pred_check_branch
        %551 = sbr.rel (%p549) target = $region40
      $region39: #{psp_loss.1} parent=31 // pred_region
        _
      $region40: #{psp_loss.1} parent=31 // pred_fallthru
        _
      // Predicated region
      $region41: #{psp_loss.1} parent=31 // pred_check
        %p552 = pneg %p156
      $region42: #{psp_loss.1} parent=31 // pred_check_branch
        %554 = sbr.rel (%p552) target = $region44
      $region43: #{psp_loss.1} parent=31 // pred_region
        _
      $region44: #{psp_loss.1} parent=31 // pred_fallthru
        _
    $region32: #{psp_loss.1} parent=5 // pred_fallthru
      _
    %p555 = scmp.le.s32.totalorder 2, %s11
    // Predicated region
    $region45: #{psp_loss.1} parent=5 // pred_check
      %p556 = pneg %p555
    $region46: #{psp_loss.1} parent=5 // pred_check_branch
      %558 = sbr.rel (%p556) target = $region48
    $region47: #{psp_loss.1} parent=5 // pred_region
      %s559 = ssub.s32 %s11, 2
      // Predicated region
      $region49: #{psp_loss.1} parent=47 // pred_check
        %p560 = pneg %p136
      $region50: #{psp_loss.1} parent=47 // pred_check_branch
        %562 = sbr.rel (%p560) target = $region52
      $region51: #{psp_loss.1} parent=47 // pred_region
        %p563 = scmp.lt.s32.totalorder %s22, 1
        %s564 = scalar_select %p563, %s22, 1
        %s565 = smul.addr %s564, 2
        %s566 = scalar_lea.vmem %s3, %s565
      $region52: #{psp_loss.1} parent=47 // pred_fallthru
        _
      // Predicated region
      $region53: #{psp_loss.1} parent=47 // pred_check
        %p567 = pneg %p162
      $region54: #{psp_loss.1} parent=47 // pred_check_branch
        %569 = sbr.rel (%p567) target = $region56
      $region55: #{psp_loss.1} parent=47 // pred_region
        %p570 = scmp.lt.s32.totalorder %s22, 1
        %s571 = scalar_select %p570, %s22, 1
        %s572 = smul.addr %s571, 2
        %s573 = scalar_lea.vmem %s4, %s572
      $region56: #{psp_loss.1} parent=47 // pred_fallthru
        _
    $region48: #{psp_loss.1} parent=5 // pred_fallthru
      _
  $region6: #{psp_loss.1} parent=0 // loop_footer
    %s15 = sadd.s32 1, %s11
  $region7: #{psp_loss.1} parent=0 // loop_footer_branch
    %10 = sbr.rel target = $region3
  $region8: #{psp_loss.1} parent=0 // loop_exit
    _

</llo_original>
